<compile_context>
chip_gen: v5e
topology: v5e:2x2
jax: 0.10.0
libtpu: 0.0.40
codegen_flags: <defaults>
</compile_context>

<pallas_src>
import jax
import jax.numpy as jnp
from jax import lax
from jax.experimental import pallas as pl
from jax.experimental.pallas import tpu as pltpu


def _round_up(x, m):
    return (x + m - 1) // m * m


# ----------------------------------------------------------------------------
# Kernels
# ----------------------------------------------------------------------------
def matmul_bias_kernel(x_ref, w_ref, b_ref, o_ref):
    """One timestep block: (1, B, K) @ (K, N) + (1, N) -> (1, B, N)."""
    o_ref[0] = (jnp.dot(x_ref[0], w_ref[...], preferred_element_type=jnp.float32)
                + b_ref[...]).astype(o_ref.dtype)


def lstm_recurrence_kernel(gx_ref, whh_ref, h_ref, h_scr, c_scr):
    """Sequential LSTM cell over the time grid.

    gx_ref:  (1, B, 4H)  precomputed x_t @ W_ih + (b_ih + b_hh)
    whh_ref: (H, 4H)     hidden->gates weights (gate order i, f, g, o)
    h_ref:   (1, B, H)   per-timestep hidden-state output
    h_scr/c_scr: (B, H)  carry state, persistent VMEM scratch across grid steps
    """
    t = pl.program_id(0)
    H = whh_ref.shape[0]

    @pl.when(t == 0)
    def _():
        h_scr[...] = jnp.zeros_like(h_scr)
        c_scr[...] = jnp.zeros_like(c_scr)

    h = h_scr[...]
    c = c_scr[...]

    # Single recurrent matmul per step; input-side work was hoisted out.
    gates = gx_ref[0] + jnp.dot(h, whh_ref[...],
                                preferred_element_type=jnp.float32)   # (B, 4H)

    # H is a multiple of 128 -> these slices are lane-tile-aligned views.
    i_g = jax.nn.sigmoid(gates[:, 0 * H:1 * H])
    f_g = jax.nn.sigmoid(gates[:, 1 * H:2 * H])
    g_g = jnp.tanh(gates[:, 2 * H:3 * H])
    o_g = jax.nn.sigmoid(gates[:, 3 * H:4 * H])

    c_new = f_g * c + i_g * g_g
    h_new = o_g * jnp.tanh(c_new)

    h_scr[...] = h_new
    c_scr[...] = c_new
    h_ref[0] = h_new.astype(h_ref.dtype)


# ----------------------------------------------------------------------------
# Wrappers
# ----------------------------------------------------------------------------
def _timewise_matmul(x, w, b):
    """x: (S, B, K) @ w: (K, N) + b: (1, N) -> (S, B, N); time axis parallel."""
    S, B, K = x.shape
    N = w.shape[1]
    return pl.pallas_call(
        matmul_bias_kernel,
        out_shape=jax.ShapeDtypeStruct((S, B, N), jnp.float32),
        grid=(S,),
        in_specs=[
            pl.BlockSpec((1, B, K), lambda t: (t, 0, 0)),   # streamed per-step
            pl.BlockSpec((K, N), lambda t: (0, 0)),          # weights resident
            pl.BlockSpec((1, N), lambda t: (0, 0)),          # bias resident
        ],
        out_specs=pl.BlockSpec((1, B, N), lambda t: (t, 0, 0)),
        compiler_params=pltpu.CompilerParams(
            dimension_semantics=("parallel",)),
    )(x, w, b)


def lstm_forward(x, params):
    """x: (batch, seq, input_dim), batch_first — same as the PyTorch module."""
    w_ih, w_hh, b_ih, b_hh, w_fc, b_fc = params
    B, S, I = x.shape
    H = w_hh.shape[1]
    O = w_fc.shape[0]

    f32 = jnp.float32
    # Hardware-tile padding: batch -> sublane (8), feature dims -> lane (128).
    Bp = _round_up(B, 8)
    Ip = _round_up(I, 128)
    Hp = _round_up(H, 128)
    Op = _round_up(O, 128)

    # Time-major, padded input (S, Bp, Ip).
    x_t = jnp.transpose(x.astype(f32), (1, 0, 2))
    x_t = jnp.pad(x_t, ((0, 0), (0, Bp - B), (0, Ip - I)))

    # Padded, transposed weights.  Gate blocks (i, f, g, o) are placed at
    # Hp-aligned column offsets so gate slices in the kernel are tile-aligned.
    # Padded entries are zero -> padded hidden units remain exactly 0.
    def pad_gate_w(w, K, Kp):
        wt = jnp.zeros((Kp, 4 * Hp), f32)
        for g in range(4):
            blk = jnp.transpose(w[g * H:(g + 1) * H, :]).astype(f32)   # (K, H)
            wt = wt.at[:K, g * Hp:g * Hp + H].set(blk)
        return wt

    wih_p = pad_gate_w(w_ih, I, Ip)                                    # (Ip, 4Hp)
    whh_p = pad_gate_w(w_hh, H, Hp)                                    # (Hp, 4Hp)

    b = (b_ih + b_hh).astype(f32)
    b_p = jnp.zeros((1, 4 * Hp), f32)
    for g in range(4):
        b_p = b_p.at[0, g * Hp:g * Hp + H].set(b[g * H:(g + 1) * H])

    wfc_p = jnp.zeros((Hp, Op), f32).at[:H, :O].set(jnp.transpose(w_fc).astype(f32))
    bfc_p = jnp.zeros((1, Op), f32).at[0, :O].set(b_fc.astype(f32))

    # 1) Input projection + combined bias for all timesteps (no time dependence).
    gx = _timewise_matmul(x_t, wih_p, b_p)                             # (S, Bp, 4Hp)

    # 2) Sequential recurrence: grid over time ("arbitrary"), h/c in persistent
    #    VMEM scratch, gx / h_seq streamed with double-buffered DMA.
    h_seq = pl.pallas_call(
        lstm_recurrence_kernel,
        out_shape=jax.ShapeDtypeStruct((S, Bp, Hp), f32),
        grid=(S,),
        in_specs=[
            pl.BlockSpec((1, Bp, 4 * Hp), lambda t: (t, 0, 0)),
            pl.BlockSpec((Hp, 4 * Hp), lambda t: (0, 0)),
        ],
        out_specs=pl.BlockSpec((1, Bp, Hp), lambda t: (t, 0, 0)),
        scratch_shapes=[pltpu.VMEM((Bp, Hp), f32),
                        pltpu.VMEM((Bp, Hp), f32)],
        compiler_params=pltpu.CompilerParams(
            dimension_semantics=("arbitrary",)),
    )(gx, whh_p)

    # 3) FC head as one lane-dense matmul per timestep, outside the recurrence.
    y = _timewise_matmul(h_seq, wfc_p, bfc_p)                          # (S, Bp, Op)

    # Back to batch_first, strip padding.
    return jnp.transpose(y, (1, 0, 2))[:B, :, :O]


def lstm_reference(x, params):
    """Pure-JAX reference matching torch.nn.LSTM (batch_first) + nn.Linear."""
    w_ih, w_hh, b_ih, b_hh, w_fc, b_fc = params
    B, S, _I = x.shape
    H = w_hh.shape[1]

    def step(carry, xt):
        h, c = carry
        gates = xt @ w_ih.T + b_ih + h @ w_hh.T + b_hh
        i = jax.nn.sigmoid(gates[:, 0 * H:1 * H])
        f = jax.nn.sigmoid(gates[:, 1 * H:2 * H])
        g = jnp.tanh(gates[:, 2 * H:3 * H])
        o = jax.nn.sigmoid(gates[:, 3 * H:4 * H])
        c = f * c + i * g
        h = o * jnp.tanh(c)
        return (h, c), h

    h0 = jnp.zeros((B, H), jnp.float32)
    c0 = jnp.zeros((B, H), jnp.float32)
    _, hs = lax.scan(step, (h0, c0), jnp.transpose(x, (1, 0, 2)))
    hs = jnp.transpose(hs, (1, 0, 2))                                  # (B, S, H)
    return hs @ w_fc.T + b_fc


if __name__ == "__main__":
    input_dim, hidden_dim, output_dim = 3, 4, 3
    batch, seq = 2, 8

    key = jax.random.PRNGKey(0)
    ks = jax.random.split(key, 7)
    stdv = 1.0 / jnp.sqrt(jnp.float32(hidden_dim))

    # Deterministic synthetic parameters (PyTorch-style uniform init ranges).
    w_ih = jax.random.uniform(ks[0], (4 * hidden_dim, input_dim), jnp.float32, -stdv, stdv)
    w_hh = jax.random.uniform(ks[1], (4 * hidden_dim, hidden_dim), jnp.float32, -stdv, stdv)
    b_ih = jax.random.uniform(ks[2], (4 * hidden_dim,), jnp.float32, -stdv, stdv)
    b_hh = jax.random.uniform(ks[3], (4 * hidden_dim,), jnp.float32, -stdv, stdv)
    w_fc = jax.random.uniform(ks[4], (output_dim, hidden_dim), jnp.float32, -stdv, stdv)
    b_fc = jax.random.uniform(ks[5], (output_dim,), jnp.float32, -stdv, stdv)
    params = (w_ih, w_hh, b_ih, b_hh, w_fc, b_fc)

    x = jax.random.normal(ks[6], (batch, seq, input_dim), jnp.float32)

    out = lstm_forward(x, params)
    jax.block_until_ready(out)

    ref = lstm_reference(x, params)
    assert out.shape == (batch, seq, output_dim)
    assert jnp.allclose(out, ref, atol=1e-5, rtol=1e-5), "Pallas output mismatch vs reference"

    print("KERNEL_OK")
</pallas_src>

<mosaic_0001>
module attributes {stable_mosaic.version = 11 : i64} {
  func.func @matmul_bias_kernel(%arg0: i32, %arg1: memref<1x8x128xf32, #tpu.memory_space<vmem>>, %arg2: memref<128x512xf32, #tpu.memory_space<vmem>>, %arg3: memref<1x512xf32, #tpu.memory_space<vmem>>, %arg4: memref<1x8x512xf32, #tpu.memory_space<vmem>>) attributes {dimension_semantics = [#tpu.dimension_semantics<parallel>], iteration_bounds = array<i64: 8>, scalar_prefetch = 0 : i64, scratch_operands = 0 : i64, tpu.core_type = #tpu.core_type<tc>, window_params = [{transform_indices = @transform_0, window_bounds = array<i64: 1, 8, 128>}, {pipeline_mode = #tpu.pipeline_mode<synchronous>, transform_indices = @transform_1, window_bounds = array<i64: 128, 512>}, {pipeline_mode = #tpu.pipeline_mode<synchronous>, transform_indices = @transform_2, window_bounds = array<i64: 1, 512>}, {transform_indices = @transform_3, window_bounds = array<i64: 1, 8, 512>}]} {
    %c0 = arith.constant 0 : index
    %c0_0 = arith.constant 0 : index
    %c0_1 = arith.constant 0 : index
    %0 = vector.load %arg1[%c0, %c0_0, %c0_1] : memref<1x8x128xf32, #tpu.memory_space<vmem>>, vector<1x8x128xf32>
    %1 = vector.shape_cast %0 : vector<1x8x128xf32> to vector<8x128xf32>
    %c0_2 = arith.constant 0 : index
    %c0_3 = arith.constant 0 : index
    %2 = vector.load %arg2[%c0_2, %c0_3] : memref<128x512xf32, #tpu.memory_space<vmem>>, vector<128x512xf32>
    %cst = arith.constant dense<0.000000e+00> : vector<8x512xf32>
    %3 = tpu.matmul %1, %2, %cst {dimension_numbers = #tpu.dot_dimension_numbers<[1], [0], [0], [1], [0, 0, 1, 1], [], []>} : vector<8x128xf32>, vector<128x512xf32>, vector<8x512xf32> -> vector<8x512xf32>
    %c0_4 = arith.constant 0 : index
    %c0_5 = arith.constant 0 : index
    %4 = vector.load %arg3[%c0_4, %c0_5] : memref<1x512xf32, #tpu.memory_space<vmem>>, vector<1x512xf32>
    %5 = vector.broadcast %4 : vector<1x512xf32> to vector<8x512xf32>
    %6 = arith.addf %3, %5 : vector<8x512xf32>
    %c0_6 = arith.constant 0 : index
    %c0_7 = arith.constant 0 : index
    %c0_8 = arith.constant 0 : index
    %7 = vector.load %arg4[%c0_6, %c0_7, %c0_8] : memref<1x8x512xf32, #tpu.memory_space<vmem>>, vector<1x8x512xf32>
    %8 = vector.shape_cast %7 : vector<1x8x512xf32> to vector<8x512xf32>
    %9 = vector.shape_cast %6 : vector<8x512xf32> to vector<1x8x512xf32>
    tpu.vector_store %arg4[%c0_6, %c0_7, %c0_8], %9 {strides = array<i32>} : memref<1x8x512xf32, #tpu.memory_space<vmem>>, vector<1x8x512xf32>,
    return
  }
  func.func @transform_0(%arg0: i32) -> (i32, i32, i32) {
    %c0_i32 = arith.constant 0 : i32
    %c0_i32_0 = arith.constant 0 : i32
    %c0_i32_1 = arith.constant 0 : i32
    return %arg0, %c0_i32, %c0_i32_0 : i32, i32, i32
  }
  func.func @transform_1(%arg0: i32) -> (i32, i32) {
    %c0_i32 = arith.constant 0 : i32
    %c0_i32_0 = arith.constant 0 : i32
    %c0_i32_1 = arith.constant 0 : i32
    return %c0_i32, %c0_i32_0 : i32, i32
  }
  func.func @transform_2(%arg0: i32) -> (i32, i32) {
    %c0_i32 = arith.constant 0 : i32
    %c0_i32_0 = arith.constant 0 : i32
    %c0_i32_1 = arith.constant 0 : i32
    return %c0_i32, %c0_i32_0 : i32, i32
  }
  func.func @transform_3(%arg0: i32) -> (i32, i32, i32) {
    %c0_i32 = arith.constant 0 : i32
    %c0_i32_0 = arith.constant 0 : i32
    %c0_i32_1 = arith.constant 0 : i32
    return %arg0, %c0_i32, %c0_i32_0 : i32, i32, i32
  }
}

</mosaic_0001>

<llo_original>
// kernel: tpu_custom_call.1
$region0: #{tpu_custom_call.1}
  #allocation0 [shape = 'u32[]', space=smem, size = 0x4, offset = 0x4, fixed_abs, tag = 'smem constant byte address 0x4 - core index']
  #allocation1 [shape = 'u32[72,128]{1,0:T(1,128)}', space=vmem, size = 0x9000, scoped, tag = 'internal scratch']
  %s0 = inlined_call_operand.hbm [shape: f32[8,8,128], index: 0, kind: input, shape index: {}]
  %s1 = inlined_call_operand.hbm [shape: f32[128,512], index: 1, kind: input, shape index: {}]
  %s2 = inlined_call_operand.hbm [shape: f32[1,512], index: 2, kind: input, shape index: {}]
  %s3 = inlined_call_operand.hbm [shape: f32[8,8,512], index: 3, kind: output, shape index: {}]
  %s4 = sld [smem:[#allocation0]]
  $region57: #{tpu_custom_call.1} parent=0
    _
  %s6 = ssub.s32 1, %s4
  %s7 = scalar_select 0, %s6, %s4
  $region1: #{tpu_custom_call.1} parent=0
    #allocation2 [shape = 'u8[8192]{0}', space=vmem, size = 0x2000, scoped, tag = 'input window, operand 0']
    #allocation3 [shape = 's32[2]{0}', space=sflag, size = 0x8, scoped, tag = 'scoped memory for tpu_custom_call.1']
    #allocation4 [shape = 's32[2]{0}', space=sflag, size = 0x8, scoped, tag = 'scoped memory for tpu_custom_call.1']
    #allocation5 [shape = 'u8[262144]{0}', space=vmem, size = 0x40000, scoped, tag = 'input window, operand 1, single buffered']
    #allocation6 [shape = 's32[1]{0}', space=sflag, size = 0x4, scoped, tag = 'scoped memory for tpu_custom_call.1']
    #allocation7 [shape = 'u8[2048]{0}', space=vmem, size = 0x800, scoped, tag = 'input window, operand 2, single buffered']
    #allocation8 [shape = 'u8[32768]{0}', space=vmem, size = 0x8000, scoped, tag = 'output window, operand 0']
    %8 = vsyncpa [#allocation3], 0
    %s9 = scalar_lea.sflag [#allocation3], 1
    %10 = vsyncpa %s9, 0
    %11 = vsyncpa [#allocation6], 0
    %12 = vsyncpa [#allocation4], 0
    %s13 = scalar_lea.sflag [#allocation4], 1
    %14 = vsyncpa %s13, 0
    loop: start=0, step=1, limit=10
    $region2: #{tpu_custom_call.1} parent=1 // loop_pre_header
      _
    $region3: #{tpu_custom_call.1} parent=1 // loop_header
      %s16 = sphi 0, %s20
      %p17 = scmp.ge.s32.totalorder %s16, 10
      %s26 = sphi 0, %s28
      %s29 = sphi 0, %s26
      %s30 = sphi 0, %s29
      %s46 = sphi 0, %s30
      %s50 = sphi 0, %s50
      %s52 = sphi 0, %s50
      %s53 = sphi 0, %s52
      %s67 = sphi 0, %s53
      %s71 = sphi 0, %s71
      %s73 = sphi 0, %s71
      %s74 = sphi 0, %s73
      %s88 = sphi 0, %s74
      %s94 = sphi 0, %s96
      %s97 = sphi 0, %s94
      %s98 = sphi 0, %s97
      %s114 = sphi 0, %s98
    $region4: #{tpu_custom_call.1} parent=1 // loop_header_branch
      %19 = sbr.rel (%p17) target = $region8
    $region5: #{tpu_custom_call.1} parent=1 // loop_body
      %s21 = ssub.s32 %s16, 1
      %s22 = ssub.s32 %s16, 2
      %s23 = sadd.s32 %s16, 1
      %s24 = ssub.s32 %s16, %s23
      %p25 = scmp.eq.s32.totalorder %s24, 0
      %s27 = sadd.s32 %s26, 1
      %s28 = scalar_select %p25, %s26, %s27
      %p31 = pneg %p25
      %p32 = scmp.eq.s32.totalorder %s16, 7
      %p33 = por %p31, %p32
      %p34 = scmp.ne.s32.totalorder %s26, %s29
      %p35 = scmp.eq.s32.totalorder %s16, 0
      %p36 = por %p34, %p35
      %p37 = scmp.ne.s32.totalorder %s26, %s29
      %p38 = scmp.eq.s32.totalorder %s21, 7
      %p39 = por %p37, %p38
      %p40 = scmp.ne.s32.totalorder %s29, %s30
      %p41 = scmp.eq.s32.totalorder %s21, 0
      %p42 = por %p40, %p41
      %p43 = scmp.ne.s32.totalorder %s29, %s30
      %p44 = scmp.eq.s32.totalorder %s22, 7
      %p45 = por %p43, %p44
      %p47 = scmp.ne.s32.totalorder %s30, %s46
      %p48 = scmp.eq.s32.totalorder %s22, 0
      %p49 = por %p47, %p48
      %s51 = sadd.s32 %s50, 1
      %p54 = scmp.eq.s32.totalorder %s16, 7
      %p55 = scmp.ne.s32.totalorder %s50, %s52
      %p56 = scmp.eq.s32.totalorder %s16, 0
      %p57 = por %p55, %p56
      %p58 = scmp.ne.s32.totalorder %s50, %s52
      %p59 = scmp.eq.s32.totalorder %s21, 7
      %p60 = por %p58, %p59
      %p61 = scmp.ne.s32.totalorder %s52, %s53
      %p62 = scmp.eq.s32.totalorder %s21, 0
      %p63 = por %p61, %p62
      %p64 = scmp.ne.s32.totalorder %s52, %s53
      %p65 = scmp.eq.s32.totalorder %s22, 7
      %p66 = por %p64, %p65
      %p68 = scmp.ne.s32.totalorder %s53, %s67
      %p69 = scmp.eq.s32.totalorder %s22, 0
      %p70 = por %p68, %p69
      %s72 = sadd.s32 %s71, 1
      %p75 = scmp.eq.s32.totalorder %s16, 7
      %p76 = scmp.ne.s32.totalorder %s71, %s73
      %p77 = scmp.eq.s32.totalorder %s16, 0
      %p78 = por %p76, %p77
      %p79 = scmp.ne.s32.totalorder %s71, %s73
      %p80 = scmp.eq.s32.totalorder %s21, 7
      %p81 = por %p79, %p80
      %p82 = scmp.ne.s32.totalorder %s73, %s74
      %p83 = scmp.eq.s32.totalorder %s21, 0
      %p84 = por %p82, %p83
      %p85 = scmp.ne.s32.totalorder %s73, %s74
      %p86 = scmp.eq.s32.totalorder %s22, 7
      %p87 = por %p85, %p86
      %p89 = scmp.ne.s32.totalorder %s74, %s88
      %p90 = scmp.eq.s32.totalorder %s22, 0
      %p91 = por %p89, %p90
      %s92 = ssub.s32 %s16, %s23
      %p93 = scmp.eq.s32.totalorder %s92, 0
      %s95 = sadd.s32 %s94, 1
      %s96 = scalar_select %p93, %s94, %s95
      %p99 = pneg %p93
      %p100 = scmp.eq.s32.totalorder %s16, 7
      %p101 = por %p99, %p100
      %p102 = scmp.ne.s32.totalorder %s94, %s97
      %p103 = scmp.eq.s32.totalorder %s16, 0
      %p104 = por %p102, %p103
      %p105 = scmp.ne.s32.totalorder %s94, %s97
      %p106 = scmp.eq.s32.totalorder %s21, 7
      %p107 = por %p105, %p106
      %p108 = scmp.ne.s32.totalorder %s97, %s98
      %p109 = scmp.eq.s32.totalorder %s21, 0
      %p110 = por %p108, %p109
      %p111 = scmp.ne.s32.totalorder %s97, %s98
      %p112 = scmp.eq.s32.totalorder %s22, 7
      %p113 = por %p111, %p112
      %p115 = scmp.ne.s32.totalorder %s98, %s114
      %p116 = scmp.eq.s32.totalorder %s22, 0
      %p117 = por %p115, %p116
      %p118 = scmp.le.s32.totalorder 1, %s16
      %p119 = scmp.lt.s32.totalorder %s16, 9
      %p120 = pnand %p118, %p119
      %p121 = pneg %p120
      // Predicated region
      $region9: #{tpu_custom_call.1} parent=5 // pred_check
        _
      $region10: #{tpu_custom_call.1} parent=5 // pred_check_branch
        %123 = sbr.rel (%p120) target = $region12
      $region11: #{tpu_custom_call.1} parent=5 // pred_region
        %s124 = ssub.s32 %s16, 1
        // Predicated region
        $region13: #{tpu_custom_call.1} parent=11 // pred_check
          %p125 = pneg %p63
        $region14: #{tpu_custom_call.1} parent=11 // pred_check_branch
          %127 = sbr.rel (%p125) target = $region16
        $region15: #{tpu_custom_call.1} parent=11 // pred_region
          %129 = vsyncadd [#allocation6], 0
          %s130 = sshll.u32 %s1, 4
          %s131 = int_to_ptr.hbm [resolvable:$true] %s130
          %s132 = sshll.u32 [#allocation5], 4
          %s133 = int_to_ptr.vmem [resolvable:$true] %s132
          %138 = dma.hbm_to_vmem [thread:$0]  %s131, 8192, %s133, [#allocation6], 512, 512, 32
        $region16: #{tpu_custom_call.1} parent=11 // pred_fallthru
          _
        // Predicated region
        $region17: #{tpu_custom_call.1} parent=11 // pred_check
          %p139 = pneg %p84
        $region18: #{tpu_custom_call.1} parent=11 // pred_check_branch
          %141 = sbr.rel (%p139) target = $region20
        $region19: #{tpu_custom_call.1} parent=11 // pred_region
          %143 = vsyncadd [#allocation6], 0
          %s145 = sshll.u32 %s2, 4
          %s146 = int_to_ptr.hbm [resolvable:$true] %s145
          %s147 = sshll.u32 [#allocation7], 4
          %s148 = int_to_ptr.vmem [resolvable:$true] %s147
          %150 = dma.hbm_to_vmem [thread:$0]  %s146, 64, %s148, [#allocation6]
        $region20: #{tpu_custom_call.1} parent=11 // pred_fallthru
          _
      $region12: #{tpu_custom_call.1} parent=5 // pred_fallthru
        _
      %p151 = scmp.lt.s32.totalorder %s16, 8
      // Predicated region
      $region21: #{tpu_custom_call.1} parent=5 // pred_check
        %p152 = pneg %p151
      $region22: #{tpu_custom_call.1} parent=5 // pred_check_branch
        %154 = sbr.rel (%p152) target = $region24
      $region23: #{tpu_custom_call.1} parent=5 // pred_region
        // Predicated region
        $region25: #{tpu_custom_call.1} parent=23 // pred_check
          %p155 = pneg %p36
        $region26: #{tpu_custom_call.1} parent=23 // pred_check_branch
          %157 = sbr.rel (%p155) target = $region28
        $region27: #{tpu_custom_call.1} parent=23 // pred_region
          %s158 = sand.u32 %s26, 1
          %s159 = scalar_lea.sflag [#allocation3], %s158
          %s160 = sand.u32 %s26, 1
          %s161 = smul.addr %s160, 8
          %s162 = scalar_lea.vmem [#allocation2], %s161
          %164 = vsyncadd %s159, 0
          %s165 = smul.addr %s16, 8
          %s166 = scalar_lea.hbm %s0, %s165
          %s168 = sshll.u32 %s166, 4
          %s169 = int_to_ptr.hbm [resolvable:$true] %s168
          %s170 = sshll.u32 %s162, 4
          %s171 = int_to_ptr.vmem [resolvable:$true] %s170
          %173 = dma.hbm_to_vmem [thread:$0]  %s169, 128, %s171, %s159
        $region28: #{tpu_custom_call.1} parent=23 // pred_fallthru
          _
      $region24: #{tpu_custom_call.1} parent=5 // pred_fallthru
        _
      %p174 = scmp.le.s32.totalorder 1, %s16
      %p175 = scmp.lt.s32.totalorder %s16, 9
      %p176 = pnand %p174, %p175
      %p177 = pneg %p176
      // Predicated region
      $region29: #{tpu_custom_call.1} parent=5 // pred_check
        _
      $region30: #{tpu_custom_call.1} parent=5 // pred_check_branch
        %179 = sbr.rel (%p176) target = $region32
      $region31: #{tpu_custom_call.1} parent=5 // pred_region
        %s180 = ssub.s32 %s16, 1
        %s181 = sand.u32 %s29, 1
        %s182 = scalar_lea.sflag [#allocation3], %s181
        %s183 = sand.u32 %s29, 1
        %s184 = smul.addr %s183, 8
        %s185 = scalar_lea.vmem [#allocation2], %s184
        // Predicated region
        $region33: #{tpu_custom_call.1} parent=31 // pred_check
          %p186 = pneg %p42
        $region34: #{tpu_custom_call.1} parent=31 // pred_check_branch
          %188 = sbr.rel (%p186) target = $region36
        $region35: #{tpu_custom_call.1} parent=31 // pred_region
          %190 = dma.done %s182, 128
        $region36: #{tpu_custom_call.1} parent=31 // pred_fallthru
          _
        // Predicated region
        $region37: #{tpu_custom_call.1} parent=31 // pred_check
          %p191 = pneg %p63
        $region38: #{tpu_custom_call.1} parent=31 // pred_check_branch
          %193 = sbr.rel (%p191) target = $region40
        $region39: #{tpu_custom_call.1} parent=31 // pred_region
          %195 = dma.done [#allocation6], 8192
        $region40: #{tpu_custom_call.1} parent=31 // pred_fallthru
          _
        // Predicated region
        $region41: #{tpu_custom_call.1} parent=31 // pred_check
          %p196 = pneg %p84
        $region42: #{tpu_custom_call.1} parent=31 // pred_check_branch
          %198 = sbr.rel (%p196) target = $region44
        $region43: #{tpu_custom_call.1} parent=31 // pred_region
          %200 = dma.done [#allocation6], 64
        $region44: #{tpu_custom_call.1} parent=31 // pred_fallthru
          _
        %s201 = sand.u32 %s29, 1
        %s202 = scalar_lea.sflag [#allocation3], %s201
        %s203 = sand.u32 %s29, 1
        %s204 = smul.addr %s203, 8
        %s205 = scalar_lea.vmem [#allocation2], %s204
        %p206 = pneg %p42
        %p207 = pneg %p39
        %p208 = pneg %p63
        %p209 = pneg %p60
        %p210 = pneg %p84
        %p211 = pneg %p81
        %p212 = pneg %p110
        %p213 = pneg %p107
        %s214 = sand.u32 %s97, 1
        %s215 = scalar_lea.sflag [#allocation4], %s214
        %s216 = sand.u32 %s97, 1
        %s217 = smul.addr %s216, 32
        %s218 = scalar_lea.vmem [#allocation8], %s217
        %v219 = vld [vmem:[%s185] sm:$0xff]
        %v220 = vld [vmem:[#allocation5] sm:$0xff]
        %v221 = vld [vmem:[#allocation5 + $0x8] sm:$0xff]
        %v222 = vld [vmem:[#allocation5 + $0x10] sm:$0xff]
        %v223 = vld [vmem:[#allocation5 + $0x18] sm:$0xff]
        %v224 = vld [vmem:[#allocation5 + $0x20] sm:$0xff]
        %v225 = vld [vmem:[#allocation5 + $0x28] sm:$0xff]
        %v226 = vld [vmem:[#allocation5 + $0x30] sm:$0xff]
        %v227 = vld [vmem:[#allocation5 + $0x38] sm:$0xff]
        %v228 = vld [vmem:[#allocation5 + $0x40] sm:$0xff]
        %v229 = vld [vmem:[#allocation5 + $0x48] sm:$0xff]
        %v230 = vld [vmem:[#allocation5 + $0x50] sm:$0xff]
        %v231 = vld [vmem:[#allocation5 + $0x58] sm:$0xff]
        %v232 = vld [vmem:[#allocation5 + $0x60] sm:$0xff]
        %v233 = vld [vmem:[#allocation5 + $0x68] sm:$0xff]
        %v234 = vld [vmem:[#allocation5 + $0x70] sm:$0xff]
        %v235 = vld [vmem:[#allocation5 + $0x78] sm:$0xff]
        %v236 = vld [vmem:[#allocation5 + $0x80] sm:$0xff]
        %v237 = vld [vmem:[#allocation5 + $0x88] sm:$0xff]
        %v238 = vld [vmem:[#allocation5 + $0x90] sm:$0xff]
        %v239 = vld [vmem:[#allocation5 + $0x98] sm:$0xff]
        %v240 = vld [vmem:[#allocation5 + $0xa0] sm:$0xff]
        %v241 = vld [vmem:[#allocation5 + $0xa8] sm:$0xff]
        %v242 = vld [vmem:[#allocation5 + $0xb0] sm:$0xff]
        %v243 = vld [vmem:[#allocation5 + $0xb8] sm:$0xff]
        %v244 = vld [vmem:[#allocation5 + $0xc0] sm:$0xff]
        %v245 = vld [vmem:[#allocation5 + $0xc8] sm:$0xff]
        %v246 = vld [vmem:[#allocation5 + $0xd0] sm:$0xff]
        %v247 = vld [vmem:[#allocation5 + $0xd8] sm:$0xff]
        %v248 = vld [vmem:[#allocation5 + $0xe0] sm:$0xff]
        %v249 = vld [vmem:[#allocation5 + $0xe8] sm:$0xff]
        %v250 = vld [vmem:[#allocation5 + $0xf0] sm:$0xff]
        %v251 = vld [vmem:[#allocation5 + $0xf8] sm:$0xff]
        %v252 = vld [vmem:[#allocation5 + $0x100] sm:$0xff]
        %v253 = vld [vmem:[#allocation5 + $0x108] sm:$0xff]
        %v254 = vld [vmem:[#allocation5 + $0x110] sm:$0xff]
        %v255 = vld [vmem:[#allocation5 + $0x118] sm:$0xff]
        %v256 = vld [vmem:[#allocation5 + $0x120] sm:$0xff]
        %v257 = vld [vmem:[#allocation5 + $0x128] sm:$0xff]
        %v258 = vld [vmem:[#allocation5 + $0x130] sm:$0xff]
        %v259 = vld [vmem:[#allocation5 + $0x138] sm:$0xff]
        %v260 = vld [vmem:[#allocation5 + $0x140] sm:$0xff]
        %v261 = vld [vmem:[#allocation5 + $0x148] sm:$0xff]
        %v262 = vld [vmem:[#allocation5 + $0x150] sm:$0xff]
        %v263 = vld [vmem:[#allocation5 + $0x158] sm:$0xff]
        %v264 = vld [vmem:[#allocation5 + $0x160] sm:$0xff]
        %v265 = vld [vmem:[#allocation5 + $0x168] sm:$0xff]
        %v266 = vld [vmem:[#allocation5 + $0x170] sm:$0xff]
        %v267 = vld [vmem:[#allocation5 + $0x178] sm:$0xff]
        %v268 = vld [vmem:[#allocation5 + $0x180] sm:$0xff]
        %v269 = vld [vmem:[#allocation5 + $0x188] sm:$0xff]
        %v270 = vld [vmem:[#allocation5 + $0x190] sm:$0xff]
        %v271 = vld [vmem:[#allocation5 + $0x198] sm:$0xff]
        %v272 = vld [vmem:[#allocation5 + $0x1a0] sm:$0xff]
        %v273 = vld [vmem:[#allocation5 + $0x1a8] sm:$0xff]
        %v274 = vld [vmem:[#allocation5 + $0x1b0] sm:$0xff]
        %v275 = vld [vmem:[#allocation5 + $0x1b8] sm:$0xff]
        %v276 = vld [vmem:[#allocation5 + $0x1c0] sm:$0xff]
        %v277 = vld [vmem:[#allocation5 + $0x1c8] sm:$0xff]
        %v278 = vld [vmem:[#allocation5 + $0x1d0] sm:$0xff]
        %v279 = vld [vmem:[#allocation5 + $0x1d8] sm:$0xff]
        %v280 = vld [vmem:[#allocation5 + $0x1e0] sm:$0xff]
        %v281 = vld [vmem:[#allocation5 + $0x1e8] sm:$0xff]
        %v282 = vld [vmem:[#allocation5 + $0x1f0] sm:$0xff]
        %v283 = vld [vmem:[#allocation5 + $0x1f8] sm:$0xff]
        %v284 = vld [vmem:[#allocation7] sm:$0xf]
        %v286 = vperm.slane %v284, 0
        %v287 = vperm.slane %v284, 1
        %v288 = vperm.slane %v284, 2
        %v289 = vperm.slane %v284, 3
        %294 = vmatpush.msra.mxu0 %v280
        %295 = vmatpush.msra.mxu0 %v276
        %296 = vmatpush.msra.mxu0 %v272
        %297 = vmatpush.msra.mxu0 %v268
        %298 = vmatpush.msra.mxu0 %v264
        %299 = vmatpush.msra.mxu0 %v260
        %300 = vmatpush.msra.mxu0 %v256
        %301 = vmatpush.msra.mxu0 %v252
        %302 = vmatpush.msra.mxu0 %v248
        %303 = vmatpush.msra.mxu0 %v244
        %304 = vmatpush.msra.mxu0 %v240
        %305 = vmatpush.msra.mxu0 %v236
        %306 = vmatpush.msra.mxu0 %v232
        %307 = vmatpush.msra.mxu0 %v228
        %308 = vmatpush.msra.mxu0 %v224
        %309 = vmatpush.msra.mxu0 %v220
        %310 = vmatmul.f32.gmra.mxu0 %v219
        %v311 = vpop.f32.mrf.mxu0
        %v312 = vadd.f32 %v286, %v311
        %313 = vdwg.mxu0
        %314 = vmatpush.msra.mxu0 %v281
        %315 = vmatpush.msra.mxu0 %v277
        %316 = vmatpush.msra.mxu0 %v273
        %317 = vmatpush.msra.mxu0 %v269
        %318 = vmatpush.msra.mxu0 %v265
        %319 = vmatpush.msra.mxu0 %v261
        %320 = vmatpush.msra.mxu0 %v257
        %321 = vmatpush.msra.mxu0 %v253
        %322 = vmatpush.msra.mxu0 %v249
        %323 = vmatpush.msra.mxu0 %v245
        %324 = vmatpush.msra.mxu0 %v241
        %325 = vmatpush.msra.mxu0 %v237
        %326 = vmatpush.msra.mxu0 %v233
        %327 = vmatpush.msra.mxu0 %v229
        %328 = vmatpush.msra.mxu0 %v225
        %329 = vmatpush.msra.mxu0 %v221
        %330 = vmatmul.f32.gmra.mxu0 %v219
        %v331 = vpop.f32.mrf.mxu0
        %v332 = vadd.f32 %v287, %v331
        %333 = vdwg.mxu0
        %334 = vmatpush.msra.mxu0 %v282
        %335 = vmatpush.msra.mxu0 %v278
        %336 = vmatpush.msra.mxu0 %v274
        %337 = vmatpush.msra.mxu0 %v270
        %338 = vmatpush.msra.mxu0 %v266
        %339 = vmatpush.msra.mxu0 %v262
        %340 = vmatpush.msra.mxu0 %v258
        %341 = vmatpush.msra.mxu0 %v254
        %342 = vmatpush.msra.mxu0 %v250
        %343 = vmatpush.msra.mxu0 %v246
        %344 = vmatpush.msra.mxu0 %v242
        %345 = vmatpush.msra.mxu0 %v238
        %346 = vmatpush.msra.mxu0 %v234
        %347 = vmatpush.msra.mxu0 %v230
        %348 = vmatpush.msra.mxu0 %v226
        %349 = vmatpush.msra.mxu0 %v222
        %350 = vmatmul.f32.gmra.mxu0 %v219
        %v351 = vpop.f32.mrf.mxu0
        %v352 = vadd.f32 %v288, %v351
        %353 = vdwg.mxu0
        %354 = vmatpush.msra.mxu0 %v283
        %355 = vmatpush.msra.mxu0 %v279
        %356 = vmatpush.msra.mxu0 %v275
        %357 = vmatpush.msra.mxu0 %v271
        %358 = vmatpush.msra.mxu0 %v267
        %359 = vmatpush.msra.mxu0 %v263
        %360 = vmatpush.msra.mxu0 %v259
        %361 = vmatpush.msra.mxu0 %v255
        %362 = vmatpush.msra.mxu0 %v251
        %363 = vmatpush.msra.mxu0 %v247
        %364 = vmatpush.msra.mxu0 %v243
        %365 = vmatpush.msra.mxu0 %v239
        %366 = vmatpush.msra.mxu0 %v235
        %367 = vmatpush.msra.mxu0 %v231
        %368 = vmatpush.msra.mxu0 %v227
        %369 = vmatpush.msra.mxu0 %v223
        %370 = vmatmul.f32.gmra.mxu0 %v219
        %v371 = vpop.f32.mrf.mxu0
        %v372 = vadd.f32 %v289, %v371
        %373 = vdwg.mxu0
        %374 = vst [vmem:[%s218] sm:$0xff] %v312
        %375 = vst [vmem:[%s218 + $0x8] sm:$0xff] %v332
        %376 = vst [vmem:[%s218 + $0x10] sm:$0xff] %v352
        %377 = vst [vmem:[%s218 + $0x18] sm:$0xff] %v372
        %s378 = sand.u32 %s97, 1
        %s379 = scalar_lea.sflag [#allocation4], %s378
        %s380 = sand.u32 %s97, 1
        %s381 = smul.addr %s380, 32
        %s382 = scalar_lea.vmem [#allocation8], %s381
        // Predicated region
        $region45: #{tpu_custom_call.1} parent=31 // pred_check
          %p383 = pneg %p107
        $region46: #{tpu_custom_call.1} parent=31 // pred_check_branch
          %385 = sbr.rel (%p383) target = $region48
        $region47: #{tpu_custom_call.1} parent=31 // pred_region
          %387 = vsyncadd %s379, 0
          %s388 = smul.addr %s21, 4
          %s389 = smul.addr %s388, 8
          %s390 = scalar_lea.hbm %s3, %s389
          %s392 = sshll.u32 %s382, 4
          %s393 = int_to_ptr.vmem [resolvable:$true] %s392
          %s394 = sshll.u32 %s390, 4
          %s395 = int_to_ptr.hbm [resolvable:$true] %s394
          %397 = dma.vmem_to_hbm [thread:$0]  %s393, 512, %s395, %s379
        $region48: #{tpu_custom_call.1} parent=31 // pred_fallthru
          _
      $region32: #{tpu_custom_call.1} parent=5 // pred_fallthru
        _
      %p398 = scmp.le.s32.totalorder 2, %s16
      // Predicated region
      $region49: #{tpu_custom_call.1} parent=5 // pred_check
        %p399 = pneg %p398
      $region50: #{tpu_custom_call.1} parent=5 // pred_check_branch
        %401 = sbr.rel (%p399) target = $region52
      $region51: #{tpu_custom_call.1} parent=5 // pred_region
        %s402 = ssub.s32 %s16, 2
        // Predicated region
        $region53: #{tpu_custom_call.1} parent=51 // pred_check
          %p403 = pneg %p113
        $region54: #{tpu_custom_call.1} parent=51 // pred_check_branch
          %405 = sbr.rel (%p403) target = $region56
        $region55: #{tpu_custom_call.1} parent=51 // pred_region
          %s406 = sand.u32 %s98, 1
          %s407 = scalar_lea.sflag [#allocation4], %s406
          %s408 = sand.u32 %s98, 1
          %s409 = smul.addr %s408, 32
          %s410 = scalar_lea.vmem [#allocation8], %s409
          %412 = dma.done %s407, 512
        $region56: #{tpu_custom_call.1} parent=51 // pred_fallthru
          _
      $region52: #{tpu_custom_call.1} parent=5 // pred_fallthru
        _
    $region6: #{tpu_custom_call.1} parent=1 // loop_footer
      %s20 = sadd.s32 1, %s16
    $region7: #{tpu_custom_call.1} parent=1 // loop_footer_branch
      %15 = sbr.rel target = $region3
    $region8: #{tpu_custom_call.1} parent=1 // loop_exit
      _
    %413 = vsyncpa [#allocation3], 1
    %s414 = scalar_lea.sflag [#allocation3], 1
    %415 = vsyncpa %s414, 1
    %416 = vsyncpa [#allocation6], 1
    %417 = vsyncpa [#allocation4], 1
    %s418 = scalar_lea.sflag [#allocation4], 1
    %419 = vsyncpa %s418, 1

</llo_original>
